<compile_context>
chip_gen: v5e
topology: v5e:2x2
jax: 0.10.0
libtpu: 0.0.40
codegen_flags: <defaults>
</compile_context>

<pallas_src>
import jax
import jax.numpy as jnp
from jax.experimental import pallas as pl
from jax.experimental.pallas import tpu as pltpu

_LANES = 128                 # vreg lane width
_MAX_BLOCK_ROWS = 8192       # 8192 x 128 x 4B = 4 MiB per f32 block
_MIN_ROWS_FOR_SPLIT = 1024   # force >=2 grid steps above this (v7x megacore)
_VMEM_LIMIT_BYTES = 48 * 1024 * 1024


def _affine_kernel(x_ref, o_ref):
    x = x_ref[...]
    # ((x + 2) * 3 - 5) / 2  ==  1.5 * x + 0.5   (constant-folded)
    o_ref[...] = (x * jnp.asarray(1.5, dtype=x.dtype)
                  + jnp.asarray(0.5, dtype=x.dtype)).astype(o_ref.dtype)


def _choose_block_rows(rows):
    if rows < _MIN_ROWS_FOR_SPLIT:
        # Single full-array block (block == full dims, so no (8,128) constraint).
        return rows
    # At least two grid steps so both v7x TensorCores get work; keep the
    # block a multiple of 32 rows (legal for f32/bf16/int8 packing), cap at
    # _MAX_BLOCK_ROWS (4 MiB f32).
    half = pl.cdiv(rows, 2)
    return min(_MAX_BLOCK_ROWS, ((half + 31) // 32) * 32)


def pt_module_forward(x):
    """Pallas equivalent of PtModule.forward: ((x + 2) * 3 - 5) / 2."""
    orig_shape = x.shape

    # PyTorch's torch.div is true division: integer inputs promote to float.
    if not jnp.issubdtype(x.dtype, jnp.floating):
        x = x.astype(jnp.float32)
    out_dtype = x.dtype

    flat = x.reshape(-1)
    total = flat.size
    aligned = (total // _LANES) * _LANES

    parts = []

    if aligned:
        rows = aligned // _LANES
        x2d = flat[:aligned].reshape(rows, _LANES)

        block_rows = _choose_block_rows(rows)
        grid = (pl.cdiv(rows, block_rows),)

        out2d = pl.pallas_call(
            _affine_kernel,
            out_shape=jax.ShapeDtypeStruct((rows, _LANES), out_dtype),
            grid=grid,
            in_specs=[pl.BlockSpec((block_rows, _LANES), lambda i: (i, 0))],
            out_specs=pl.BlockSpec((block_rows, _LANES), lambda i: (i, 0)),
            input_output_aliases={0: 0},
            compiler_params=pltpu.CompilerParams(
                dimension_semantics=("parallel",),
                vmem_limit_bytes=_VMEM_LIMIT_BYTES,
            ),
        )(x2d)
        parts.append(out2d.reshape(-1))

    if aligned < total:
        # Ragged tail (< 128 elements): trivial XLA affine, no extra HBM pass
        # over the main body and no pad/slice copies.
        tail = flat[aligned:]
        parts.append(tail * jnp.asarray(1.5, dtype=out_dtype)
                     + jnp.asarray(0.5, dtype=out_dtype))

    out_flat = parts[0] if len(parts) == 1 else jnp.concatenate(parts)
    return out_flat.reshape(orig_shape)


if __name__ == "__main__":
    key = jax.random.PRNGKey(0)
    x = jax.random.normal(key, (2, 4, 16, 16), dtype=jnp.float32)

    out = pt_module_forward(x)
    out = jax.block_until_ready(out)

    # Pure-JAX reference (literal PyTorch op order). The kernel uses the
    # constant-folded 1.5*x + 0.5 form, which can differ by ~1 ulp.
    ref = ((x + 2.0) * 3.0 - 5.0) / 2.0
    assert out.shape == x.shape and out.dtype == x.dtype
    assert jnp.allclose(out, ref, atol=1e-5, rtol=1e-5)

    print("KERNEL_OK")
</pallas_src>

<mosaic_0001>
module attributes {stable_mosaic.version = 11 : i64} {
  func.func @_affine_kernel(%arg0: i32, %arg1: memref<16x128xf32, #tpu.memory_space<vmem>>, %arg2: memref<16x128xf32, #tpu.memory_space<vmem>>) attributes {dimension_semantics = [#tpu.dimension_semantics<parallel>], iteration_bounds = array<i64: 1>, scalar_prefetch = 0 : i64, scratch_operands = 0 : i64, tpu.core_type = #tpu.core_type<tc>, window_params = [{transform_indices = @transform_0, window_bounds = array<i64: 16, 128>}, {transform_indices = @transform_1, window_bounds = array<i64: 16, 128>}]} {
    %c0 = arith.constant 0 : index
    %c0_0 = arith.constant 0 : index
    %0 = vector.load %arg1[%c0, %c0_0] : memref<16x128xf32, #tpu.memory_space<vmem>>, vector<16x128xf32>
    %cst = arith.constant 1.500000e+00 : f32
    %1 = vector.broadcast %cst : f32 to vector<16x128xf32>
    %2 = arith.mulf %0, %1 : vector<16x128xf32>
    %cst_1 = arith.constant 5.000000e-01 : f32
    %3 = vector.broadcast %cst_1 : f32 to vector<16x128xf32>
    %4 = arith.addf %2, %3 : vector<16x128xf32>
    %c0_2 = arith.constant 0 : index
    %c0_3 = arith.constant 0 : index
    %5 = vector.load %arg2[%c0_2, %c0_3] : memref<16x128xf32, #tpu.memory_space<vmem>>, vector<16x128xf32>
    tpu.vector_store %arg2[%c0_2, %c0_3], %4 {strides = array<i32>} : memref<16x128xf32, #tpu.memory_space<vmem>>, vector<16x128xf32>,
    return
  }
  func.func @transform_0(%arg0: i32) -> (i32, i32) {
    %c0_i32 = arith.constant 0 : i32
    %c0_i32_0 = arith.constant 0 : i32
    return %arg0, %c0_i32 : i32, i32
  }
  func.func @transform_1(%arg0: i32) -> (i32, i32) {
    %c0_i32 = arith.constant 0 : i32
    %c0_i32_0 = arith.constant 0 : i32
    return %arg0, %c0_i32 : i32, i32
  }
}

</mosaic_0001>

<llo_original>
// kernel: tpu_custom_call.1
$region0: #{tpu_custom_call.1}
  #allocation0 [shape = 'u32[]', space=smem, size = 0x4, offset = 0x4, fixed_abs, tag = 'smem constant byte address 0x4 - core index']
  #allocation1 [shape = 'u32[72,128]{1,0:T(1,128)}', space=vmem, size = 0x9000, scoped, tag = 'internal scratch']
  %s0 = inlined_call_operand.hbm [shape: f32[16,128], index: 0, kind: input, shape index: {}, may-alias: {0,1}]
  %s1 = inlined_call_operand.hbm [shape: f32[16,128], index: 1, kind: output, shape index: {}, may-alias: {0,1}]
  %s2 = sld [smem:[#allocation0]]
  $region18: #{tpu_custom_call.1} parent=0
    _
  %s4 = ssub.s32 1, %s2
  %s5 = scalar_select 0, %s4, %s2
  $region1: #{tpu_custom_call.1} parent=0
    #allocation2 [shape = 'u8[8192]{0}', space=vmem, size = 0x2000, scoped, tag = 'input window, operand 0, single buffered']
    #allocation3 [shape = 's32[1]{0}', space=sflag, size = 0x4, scoped, tag = 'scoped memory for tpu_custom_call.1']
    #allocation4 [shape = 's32[1]{0}', space=sflag, size = 0x4, scoped, tag = 'scoped memory for tpu_custom_call.1']
    #allocation5 [shape = 'u8[8192]{0}', space=vmem, size = 0x2000, scoped, tag = 'output window, operand 0, single buffered']
    %6 = vsyncpa [#allocation3], 0
    %7 = vsyncpa [#allocation4], 0
    // Predicated region
    $region2: #{tpu_custom_call.1} parent=1 // pred_check
      _
    $region3: #{tpu_custom_call.1} parent=1 // pred_check_branch
      %9 = sbr.rel (0) target = $region5
    $region4: #{tpu_custom_call.1} parent=1 // pred_region
      %11 = vsyncadd [#allocation3], 0
      %s12 = sshll.u32 %s0, 4
      %s13 = int_to_ptr.hbm [resolvable:$true] %s12
      %s14 = sshll.u32 [#allocation2], 4
      %s15 = int_to_ptr.vmem [resolvable:$true] %s14
      %20 = dma.hbm_to_vmem [thread:$0]  %s13, 256, %s15, [#allocation3], 128, 128, 8
    $region5: #{tpu_custom_call.1} parent=1 // pred_fallthru
      _
    // Predicated region
    $region6: #{tpu_custom_call.1} parent=1 // pred_check
      _
    $region7: #{tpu_custom_call.1} parent=1 // pred_check_branch
      %22 = sbr.rel (0) target = $region9
    $region8: #{tpu_custom_call.1} parent=1 // pred_region
      %24 = dma.done [#allocation3], 256
    $region9: #{tpu_custom_call.1} parent=1 // pred_fallthru
      _
    %v25 = vld [vmem:[#allocation2] sm:$0xff]
    %v26 = vld [vmem:[#allocation2 + $0x8] sm:$0xff]
    %v27 = vmul.f32 %v25, 1.5
    %v28 = vmul.f32 %v26, 1.5
    %v29 = vadd.f32 %v27, 0.5
    %v30 = vadd.f32 %v28, 0.5
    %31 = vst [vmem:[#allocation5] sm:$0xff] %v29
    %32 = vst [vmem:[#allocation5 + $0x8] sm:$0xff] %v30
    // Predicated region
    $region10: #{tpu_custom_call.1} parent=1 // pred_check
      _
    $region11: #{tpu_custom_call.1} parent=1 // pred_check_branch
      %34 = sbr.rel (0) target = $region13
    $region12: #{tpu_custom_call.1} parent=1 // pred_region
      %36 = vsyncadd [#allocation4], 0
      %s37 = sshll.u32 [#allocation5], 4
      %s38 = int_to_ptr.vmem [resolvable:$true] %s37
      %s39 = sshll.u32 %s1, 4
      %s40 = int_to_ptr.hbm [resolvable:$true] %s39
      %45 = dma.vmem_to_hbm [thread:$0]  %s38, 256, %s40, [#allocation4], 128, 128, 8
    $region13: #{tpu_custom_call.1} parent=1 // pred_fallthru
      _
    // Predicated region
    $region14: #{tpu_custom_call.1} parent=1 // pred_check
      _
    $region15: #{tpu_custom_call.1} parent=1 // pred_check_branch
      %47 = sbr.rel (0) target = $region17
    $region16: #{tpu_custom_call.1} parent=1 // pred_region
      %49 = dma.done [#allocation4], 256
    $region17: #{tpu_custom_call.1} parent=1 // pred_fallthru
      _
    %50 = vsyncpa [#allocation3], 1
    %51 = vsyncpa [#allocation4], 1

</llo_original>
